<compile_context>
chip_gen: v7x
topology: tpu7x:2x2x1
jax: 0.10.0
libtpu: 0.0.40
codegen_flags: <defaults>
</compile_context>

<pallas_src>
import jax
import jax.numpy as jnp
from jax.experimental import pallas as pl
from jax.experimental.pallas import tpu as pltpu  # noqa: F401  (TPU backend)


def _attn_kernel(x1_ref, wq_ref, bq_ref, x2_ref, wv_ref, bv_ref, mask_ref, out_ref):
    # ---- q = x1 @ Wq^T + bq  -> (B, 32) ----
    q = jnp.dot(x1_ref[...], wq_ref[...], preferred_element_type=jnp.float32)
    q = q + bq_ref[...]

    # ---- softmax over last dim ----
    m = jnp.max(q, axis=-1, keepdims=True)
    e = jnp.exp(q - m)
    p = e / jnp.sum(e, axis=-1, keepdims=True)

    # ---- dropout, p = 0.5 (train mode): mask is {0, 2} pre-scaled keep mask ----
    dq = p * mask_ref[...]

    # ---- v = x2 @ Wv^T + bv  -> (S, 32) ----
    v = jnp.dot(x2_ref[...], wv_ref[...], preferred_element_type=jnp.float32)
    v = v + bv_ref[...]

    # ---- output = dropout(softmax(q)) @ v  -> (B, 32) ----
    out_ref[...] = jnp.dot(dq, v, preferred_element_type=jnp.float32)


def init_params(key):
    """PyTorch-style Linear init, stored pre-transposed / pre-reshaped for the kernel."""
    def linear(key, fan_in, fan_out):
        kw, kb = jax.random.split(key)
        bound = 1.0 / jnp.sqrt(fan_in)
        w = jax.random.uniform(kw, (fan_out, fan_in), jnp.float32, -bound, bound)
        b = jax.random.uniform(kb, (fan_out,), jnp.float32, -bound, bound)
        return w.T, b.reshape(1, fan_out)        # (in, out), (1, out)

    kq, kk, kv = jax.random.split(key, 3)
    wq_t, bq = linear(kq, 16, 32)
    wk_t, bk = linear(kk, 20, 32)   # TODO(synk): linear_k is dead code in the torch forward
    wv_t, bv = linear(kv, 4, 32)
    return dict(wq_t=wq_t, bq=bq, wk_t=wk_t, bk=bk, wv_t=wv_t, bv=bv)


def model_forward(x1, x2, params, dropout_key, training=True):
    B, _ = x1.shape                 # (4, 16)
    S, _ = x2.shape                 # (32, 4)
    H = params["wq_t"].shape[1]     # 32
    assert S == H, "torch.matmul((B,1,H),(S,H)) requires S == H"

    # Dropout keep-mask, pre-scaled by 1/(1-p) = 2.0.  Host-side randomness:
    # works on TPU and in interpret mode, and keeps the kernel body all-VPU/MXU.
    if training:
        keep = jax.random.bernoulli(dropout_key, 0.5, (B, H))
        mask = keep.astype(jnp.float32) * 2.0
    else:
        mask = jnp.ones((B, H), jnp.float32)

    # Minimal-overhead pallas_call: no grid, no BlockSpecs, no scalar prefetch.
    # All operands are tiny full-array VMEM blocks; kernel runs once.
    # TODO(synk): if this forward is called over many independent (x1, x2)
    # instances, fold that batch into a grid axis (dimension_semantics=
    # ("parallel",)) so v7x's two TensorCores split the work.
    out = pl.pallas_call(
        _attn_kernel,
        out_shape=jax.ShapeDtypeStruct((B, H), jnp.float32),
    )(
        x1,
        params["wq_t"],
        params["bq"],
        x2,
        params["wv_t"],
        params["bv"],
        mask,
    )
    # torch returns (B, 1, 32) because of the unsqueeze(1) on q
    return out.reshape(B, 1, H)


if __name__ == "__main__":
    key = jax.random.PRNGKey(0)
    k_params, k_x1, k_x2, k_drop = jax.random.split(key, 4)

    params = init_params(k_params)
    x1 = jax.random.normal(k_x1, (4, 16), jnp.float32)   # like torch.randn(4, 16)
    x2 = jax.random.normal(k_x2, (32, 4), jnp.float32)   # made consistent with the forward

    out = model_forward(x1, x2, params, dropout_key=k_drop, training=True)
    jax.block_until_ready(out)
    assert out.shape == (4, 1, 32) and out.dtype == jnp.float32
    assert bool(jnp.all(jnp.isfinite(out)))
    print("KERNEL_OK")
</pallas_src>

<mosaic_0001>
module attributes {stable_mosaic.version = 11 : i64} {
  func.func @_attn_kernel(%arg0: memref<4x16xf32, #tpu.memory_space<vmem>>, %arg1: memref<16x32xf32, #tpu.memory_space<vmem>>, %arg2: memref<1x32xf32, #tpu.memory_space<vmem>>, %arg3: memref<32x4xf32, #tpu.memory_space<vmem>>, %arg4: memref<4x32xf32, #tpu.memory_space<vmem>>, %arg5: memref<1x32xf32, #tpu.memory_space<vmem>>, %arg6: memref<4x32xf32, #tpu.memory_space<vmem>>, %arg7: memref<4x32xf32, #tpu.memory_space<vmem>>) attributes {dimension_semantics = [], scalar_prefetch = 0 : i64, scratch_operands = 0 : i64, tpu.core_type = #tpu.core_type<tc>} {
    %c0 = arith.constant 0 : index
    %c0_0 = arith.constant 0 : index
    %0 = vector.load %arg0[%c0, %c0_0] : memref<4x16xf32, #tpu.memory_space<vmem>>, vector<4x16xf32>
    %c0_1 = arith.constant 0 : index
    %c0_2 = arith.constant 0 : index
    %1 = vector.load %arg1[%c0_1, %c0_2] : memref<16x32xf32, #tpu.memory_space<vmem>>, vector<16x32xf32>
    %cst = arith.constant dense<0.000000e+00> : vector<4x32xf32>
    %2 = tpu.matmul %0, %1, %cst {dimension_numbers = #tpu.dot_dimension_numbers<[1], [0], [0], [1], [0, 0, 1, 1], [], []>} : vector<4x16xf32>, vector<16x32xf32>, vector<4x32xf32> -> vector<4x32xf32>
    %c0_3 = arith.constant 0 : index
    %c0_4 = arith.constant 0 : index
    %3 = vector.load %arg2[%c0_3, %c0_4] : memref<1x32xf32, #tpu.memory_space<vmem>>, vector<1x32xf32>
    %4 = vector.broadcast %3 : vector<1x32xf32> to vector<4x32xf32>
    %5 = arith.addf %2, %4 : vector<4x32xf32>
    %cst_5 = arith.constant dense<0xFF800000> : vector<4xf32>
    %6 = vector.multi_reduction <maximumf>, %5, %cst_5 [1] : vector<4x32xf32> to vector<4xf32>
    %7 = vector.shape_cast %6 : vector<4xf32> to vector<4x1xf32>
    %8 = vector.broadcast %7 : vector<4x1xf32> to vector<4x32xf32>
    %9 = arith.subf %5, %8 : vector<4x32xf32>
    %10 = math.exp %9 : vector<4x32xf32>
    %cst_6 = arith.constant dense<0.000000e+00> : vector<4xf32>
    %11 = vector.multi_reduction <add>, %10, %cst_6 [1] : vector<4x32xf32> to vector<4xf32>
    %12 = vector.shape_cast %11 : vector<4xf32> to vector<4x1xf32>
    %13 = vector.broadcast %12 : vector<4x1xf32> to vector<4x32xf32>
    %14 = arith.divf %10, %13 : vector<4x32xf32>
    %c0_7 = arith.constant 0 : index
    %c0_8 = arith.constant 0 : index
    %15 = vector.load %arg6[%c0_7, %c0_8] : memref<4x32xf32, #tpu.memory_space<vmem>>, vector<4x32xf32>
    %16 = arith.mulf %14, %15 : vector<4x32xf32>
    %c0_9 = arith.constant 0 : index
    %c0_10 = arith.constant 0 : index
    %17 = vector.load %arg3[%c0_9, %c0_10] : memref<32x4xf32, #tpu.memory_space<vmem>>, vector<32x4xf32>
    %c0_11 = arith.constant 0 : index
    %c0_12 = arith.constant 0 : index
    %18 = vector.load %arg4[%c0_11, %c0_12] : memref<4x32xf32, #tpu.memory_space<vmem>>, vector<4x32xf32>
    %cst_13 = arith.constant dense<0.000000e+00> : vector<32x32xf32>
    %19 = tpu.matmul %17, %18, %cst_13 {dimension_numbers = #tpu.dot_dimension_numbers<[1], [0], [0], [1], [0, 0, 1, 1], [], []>} : vector<32x4xf32>, vector<4x32xf32>, vector<32x32xf32> -> vector<32x32xf32>
    %c0_14 = arith.constant 0 : index
    %c0_15 = arith.constant 0 : index
    %20 = vector.load %arg5[%c0_14, %c0_15] : memref<1x32xf32, #tpu.memory_space<vmem>>, vector<1x32xf32>
    %21 = vector.broadcast %20 : vector<1x32xf32> to vector<32x32xf32>
    %22 = arith.addf %19, %21 : vector<32x32xf32>
    %cst_16 = arith.constant dense<0.000000e+00> : vector<4x32xf32>
    %23 = tpu.matmul %16, %22, %cst_16 {dimension_numbers = #tpu.dot_dimension_numbers<[1], [0], [0], [1], [0, 0, 1, 1], [], []>} : vector<4x32xf32>, vector<32x32xf32>, vector<4x32xf32> -> vector<4x32xf32>
    %c0_17 = arith.constant 0 : index
    %c0_18 = arith.constant 0 : index
    %24 = vector.load %arg7[%c0_17, %c0_18] : memref<4x32xf32, #tpu.memory_space<vmem>>, vector<4x32xf32>
    tpu.vector_store %arg7[%c0_17, %c0_18], %23 {strides = array<i32>} : memref<4x32xf32, #tpu.memory_space<vmem>>, vector<4x32xf32>,
    return
  }
}

</mosaic_0001>

<llo_original>
// kernel: tpu_custom_call.1
$region0: #{tpu_custom_call.1}
  #allocation0 [shape = 'u32[]', space=smem, size = 0x4, offset = 0x4, fixed_abs, tag = 'smem constant byte address 0x4 - core index']
  #allocation1 [shape = 'u32[144,128]{1,0:T(1,128)}', space=vmem, size = 0x12000, scoped, tag = 'internal scratch']
  %s0 = inlined_call_operand.vmem [shape: f32[4,16], index: 0, kind: input, shape index: {}]
  %s1 = inlined_call_operand.vmem [shape: f32[16,32], index: 1, kind: input, shape index: {}]
  %s2 = inlined_call_operand.vmem [shape: f32[1,32], index: 2, kind: input, shape index: {}]
  %s3 = inlined_call_operand.vmem [shape: f32[32,4], index: 3, kind: input, shape index: {}]
  %s4 = inlined_call_operand.vmem [shape: f32[4,32], index: 4, kind: input, shape index: {}]
  %s5 = inlined_call_operand.vmem [shape: f32[1,32], index: 5, kind: input, shape index: {}]
  %s6 = inlined_call_operand.vmem [shape: f32[4,32], index: 6, kind: input, shape index: {}]
  %s7 = inlined_call_operand.hbm [shape: f32[4,32], index: 7, kind: output, shape index: {}]
  %s8 = sld [smem:[#allocation0]]
  $region38: #{tpu_custom_call.1} parent=0
    _
  %s10 = ssub.s32 1, %s8
  %s11 = scalar_select 0, %s10, %s8
  $region1: #{tpu_custom_call.1} parent=0
    #allocation2 [shape = 'u8[2048]{0}', space=vmem, size = 0x800, scoped, tag = 'output window, operand 0, single buffered']
    #allocation3 [shape = 's32[1]{0}', space=sflag, size = 0x4, scoped, tag = 'scoped memory for tpu_custom_call.1']
    %12 = vsyncpa [#allocation3], 0
    // Predicated region
    $region2: #{tpu_custom_call.1} parent=1 // pred_check
      _
    $region3: #{tpu_custom_call.1} parent=1 // pred_check_branch
      %14 = sbr.rel (0) target = $region5
    $region4: #{tpu_custom_call.1} parent=1 // pred_region
      _
    $region5: #{tpu_custom_call.1} parent=1 // pred_fallthru
      _
    // Predicated region
    $region6: #{tpu_custom_call.1} parent=1 // pred_check
      _
    $region7: #{tpu_custom_call.1} parent=1 // pred_check_branch
      %16 = sbr.rel (0) target = $region9
    $region8: #{tpu_custom_call.1} parent=1 // pred_region
      _
    $region9: #{tpu_custom_call.1} parent=1 // pred_fallthru
      _
    // Predicated region
    $region10: #{tpu_custom_call.1} parent=1 // pred_check
      _
    $region11: #{tpu_custom_call.1} parent=1 // pred_check_branch
      %18 = sbr.rel (0) target = $region13
    $region12: #{tpu_custom_call.1} parent=1 // pred_region
      _
    $region13: #{tpu_custom_call.1} parent=1 // pred_fallthru
      _
    // Predicated region
    $region14: #{tpu_custom_call.1} parent=1 // pred_check
      _
    $region15: #{tpu_custom_call.1} parent=1 // pred_check_branch
      %20 = sbr.rel (0) target = $region17
    $region16: #{tpu_custom_call.1} parent=1 // pred_region
      _
    $region17: #{tpu_custom_call.1} parent=1 // pred_fallthru
      _
    // Predicated region
    $region18: #{tpu_custom_call.1} parent=1 // pred_check
      _
    $region19: #{tpu_custom_call.1} parent=1 // pred_check_branch
      %22 = sbr.rel (0) target = $region21
    $region20: #{tpu_custom_call.1} parent=1 // pred_region
      _
    $region21: #{tpu_custom_call.1} parent=1 // pred_fallthru
      _
    // Predicated region
    $region22: #{tpu_custom_call.1} parent=1 // pred_check
      _
    $region23: #{tpu_custom_call.1} parent=1 // pred_check_branch
      %24 = sbr.rel (0) target = $region25
    $region24: #{tpu_custom_call.1} parent=1 // pred_region
      _
    $region25: #{tpu_custom_call.1} parent=1 // pred_fallthru
      _
    // Predicated region
    $region26: #{tpu_custom_call.1} parent=1 // pred_check
      _
    $region27: #{tpu_custom_call.1} parent=1 // pred_check_branch
      %26 = sbr.rel (0) target = $region29
    $region28: #{tpu_custom_call.1} parent=1 // pred_region
      _
    $region29: #{tpu_custom_call.1} parent=1 // pred_fallthru
      _
    %v27 = vld [vmem:[%s0] sm:$0xf]
    %v28 = vld [vmem:[%s1] sm:$0xff]
    %v29 = vld [vmem:[%s1 + $0x8] sm:$0xff]
    %v30 = vld [vmem:[%s2] sm:$0x1]
    %v32 = vlaneseq
    %v33 = vshrl.u32 %v32, 7
    %v34 = vsub.s32 0, %v33
    %v35 = vrot.slane %v30, %v34
    %vm37 = vcmask 130048
    %v39 = vsel %vm37, %v27, 0
    %41 = vmatprep.subr.mxu0 0.0
    %42 = vmatpush1.msra.mxu0 %v28
    %43 = vmatprep.subr.mxu0 0.0
    %44 = vmatpush1.msra.mxu0 %v29
    %45 = vmatprep.subr.mxu0 0.0
    %46 = vmatpush1.msra.mxu0 0.0
    %47 = vmatprep.subr.mxu0 0.0
    %48 = vmatpush1.msra.mxu0 0.0
    %49 = vmatprep.subr.mxu0 0.0
    %50 = vmatpush1.msra.mxu0 0.0
    %51 = vmatprep.subr.mxu0 0.0
    %52 = vmatpush1.msra.mxu0 0.0
    %53 = vmatprep.subr.mxu0 0.0
    %54 = vmatpush1.msra.mxu0 0.0
    %55 = vmatprep.subr.mxu0 0.0
    %56 = vmatpush1.msra.mxu0 0.0
    %57 = vmatprep.subr.mxu0 0.0
    %58 = vmatpush1.msra.mxu0 0.0
    %59 = vmatprep.subr.mxu0 0.0
    %60 = vmatpush1.msra.mxu0 0.0
    %61 = vmatprep.subr.mxu0 0.0
    %62 = vmatpush1.msra.mxu0 0.0
    %63 = vmatprep.subr.mxu0 0.0
    %64 = vmatpush1.msra.mxu0 0.0
    %65 = vmatprep.subr.mxu0 0.0
    %66 = vmatpush1.msra.mxu0 0.0
    %67 = vmatprep.subr.mxu0 0.0
    %68 = vmatpush1.msra.mxu0 0.0
    %69 = vmatprep.subr.mxu0 0.0
    %70 = vmatpush1.msra.mxu0 0.0
    %71 = vmatprep.subr.mxu0 0.0
    %72 = vmatpush1.msra.mxu0 0.0
    %73 = vmatprep.subr.mxu0 0.0
    %74 = vmatpush1.msra.mxu0 0.0
    %75 = vmatprep.subr.mxu0 0.0
    %76 = vmatpush1.msra.mxu0 0.0
    %77 = vmatprep.subr.mxu0 0.0
    %78 = vmatpush1.msra.mxu0 0.0
    %79 = vmatprep.subr.mxu0 0.0
    %80 = vmatpush1.msra.mxu0 0.0
    %81 = vmatprep.subr.mxu0 0.0
    %82 = vmatpush1.msra.mxu0 0.0
    %83 = vmatprep.subr.mxu0 0.0
    %84 = vmatpush1.msra.mxu0 0.0
    %85 = vmatprep.subr.mxu0 0.0
    %86 = vmatpush1.msra.mxu0 0.0
    %87 = vmatprep.subr.mxu0 0.0
    %88 = vmatpush1.msra.mxu0 0.0
    %89 = vmatprep.subr.mxu0 0.0
    %90 = vmatpush1.msra.mxu0 0.0
    %91 = vmatprep.subr.mxu0 0.0
    %92 = vmatpush1.msra.mxu0 0.0
    %93 = vmatprep.subr.mxu0 0.0
    %94 = vmatpush1.msra.mxu0 0.0
    %95 = vmatprep.subr.mxu0 0.0
    %96 = vmatpush1.msra.mxu0 0.0
    %97 = vmatprep.subr.mxu0 0.0
    %98 = vmatpush1.msra.mxu0 0.0
    %99 = vmatprep.subr.mxu0 0.0
    %100 = vmatpush1.msra.mxu0 0.0
    %101 = vmatprep.subr.mxu0 0.0
    %102 = vmatpush1.msra.mxu0 0.0
    %103 = vmatprep.subr.mxu0 0.0
    %104 = vmatpush1.msra.mxu0 0.0
    %105 = vmatprep.mubr.f32.mxu0 0.0
    %106 = vmatmul.mubr.f32.gmra.mrb[0].mxu0 %v39
    %v107 = vpop.f32.mrb[0].mxu0
    %v108 = vadd.f32 %v35, %v107
    %v109 = vpop.f32.mrb[0].mxu0
    %110 = vdwg.mxu0
    %vm111 = vcmask 257024
    %v112 = vsel %vm111, %v108, -inf
    %113 = vmax.xlane.f32.xlu0 %v112
    %v114 = vpop.xlane.xlu0 %113
    %v115 = vsub.f32 %v108, %v114
    %v116 = vmul.f32 %v115, 1.442695
    %v117 = vpow.pop %v116
    %v118 = vsel %vm111, %v117, 0.0
    %119 = vadd.xlane.f32.xlu0 %v118
    %v120 = vpop.xlane.xlu0 %119
    %v121 = vrcp.pop %v120
    %v122 = vmul.f32 %v117, %v121
    %v123 = vld [vmem:[%s6] sm:$0xf]
    %v124 = vmul.f32 %v122, %v123
    %v125 = vld [vmem:[%s3] sm:$0xff]
    %v126 = vld [vmem:[%s3 + $0x8] sm:$0xff]
    %v127 = vld [vmem:[%s3 + $0x10] sm:$0xff]
    %v128 = vld [vmem:[%s3 + $0x18] sm:$0xff]
    %v129 = vld [vmem:[%s4] sm:$0xf]
    %v130 = vld [vmem:[%s5] sm:$0x1]
    %v132 = vlaneseq
    %v133 = vshrl.u32 %v132, 7
    %v134 = vsub.s32 0, %v133
    %v135 = vrot.slane %v130, %v134
    %vm137 = vcmask 31744
    %v139 = vsel %vm137, %v125, 0
    %v142 = vsel %vm137, %v126, 0
    %v145 = vsel %vm137, %v127, 0
    %v148 = vsel %vm137, %v128, 0
    %vm150 = vcmask 1043456
    %v152 = vsel %vm150, %v129, 0
    %154 = vmatprep.subr.mxu0 0.0
    %155 = vmatpush1.msra.mxu0 %v152
    %156 = vmatprep.subr.mxu0 0.0
    %157 = vmatpush1.msra.mxu0 0.0
    %158 = vmatprep.subr.mxu0 0.0
    %159 = vmatpush1.msra.mxu0 0.0
    %160 = vmatprep.subr.mxu0 0.0
    %161 = vmatpush1.msra.mxu0 0.0
    %162 = vmatprep.subr.mxu0 0.0
    %163 = vmatpush1.msra.mxu0 0.0
    %164 = vmatprep.subr.mxu0 0.0
    %165 = vmatpush1.msra.mxu0 0.0
    %166 = vmatprep.subr.mxu0 0.0
    %167 = vmatpush1.msra.mxu0 0.0
    %168 = vmatprep.subr.mxu0 0.0
    %169 = vmatpush1.msra.mxu0 0.0
    %170 = vmatprep.subr.mxu0 0.0
    %171 = vmatpush1.msra.mxu0 0.0
    %172 = vmatprep.subr.mxu0 0.0
    %173 = vmatpush1.msra.mxu0 0.0
    %174 = vmatprep.subr.mxu0 0.0
    %175 = vmatpush1.msra.mxu0 0.0
    %176 = vmatprep.subr.mxu0 0.0
    %177 = vmatpush1.msra.mxu0 0.0
    %178 = vmatprep.subr.mxu0 0.0
    %179 = vmatpush1.msra.mxu0 0.0
    %180 = vmatprep.subr.mxu0 0.0
    %181 = vmatpush1.msra.mxu0 0.0
    %182 = vmatprep.subr.mxu0 0.0
    %183 = vmatpush1.msra.mxu0 0.0
    %184 = vmatprep.subr.mxu0 0.0
    %185 = vmatpush1.msra.mxu0 0.0
    %186 = vmatprep.subr.mxu0 0.0
    %187 = vmatpush1.msra.mxu0 0.0
    %188 = vmatprep.subr.mxu0 0.0
    %189 = vmatpush1.msra.mxu0 0.0
    %190 = vmatprep.subr.mxu0 0.0
    %191 = vmatpush1.msra.mxu0 0.0
    %192 = vmatprep.subr.mxu0 0.0
    %193 = vmatpush1.msra.mxu0 0.0
    %194 = vmatprep.subr.mxu0 0.0
    %195 = vmatpush1.msra.mxu0 0.0
    %196 = vmatprep.subr.mxu0 0.0
    %197 = vmatpush1.msra.mxu0 0.0
    %198 = vmatprep.subr.mxu0 0.0
    %199 = vmatpush1.msra.mxu0 0.0
    %200 = vmatprep.subr.mxu0 0.0
    %201 = vmatpush1.msra.mxu0 0.0
    %202 = vmatprep.subr.mxu0 0.0
    %203 = vmatpush1.msra.mxu0 0.0
    %204 = vmatprep.subr.mxu0 0.0
    %205 = vmatpush1.msra.mxu0 0.0
    %206 = vmatprep.subr.mxu0 0.0
    %207 = vmatpush1.msra.mxu0 0.0
    %208 = vmatprep.subr.mxu0 0.0
    %209 = vmatpush1.msra.mxu0 0.0
    %210 = vmatprep.subr.mxu0 0.0
    %211 = vmatpush1.msra.mxu0 0.0
    %212 = vmatprep.subr.mxu0 0.0
    %213 = vmatpush1.msra.mxu0 0.0
    %214 = vmatprep.subr.mxu0 0.0
    %215 = vmatpush1.msra.mxu0 0.0
    %216 = vmatprep.subr.mxu0 0.0
    %217 = vmatpush1.msra.mxu0 0.0
    %218 = vmatprep.mubr.f32.mxu0 0.0
    %219 = vmatmul.mubr.f32.gmra.mrb[0].mxu0 %v139
    %v220 = vpop.f32.mrb[0].mxu0
    %v221 = vadd.f32 %v135, %v220
    %v222 = vpop.f32.mrb[0].mxu0
    %223 = vmatprep.mubr.f32.mxu0 0.0
    %224 = vmatmul.mubr.f32.gmra.mrb[0].mxu0 %v142
    %v225 = vpop.f32.mrb[0].mxu0
    %v226 = vadd.f32 %v135, %v225
    %v227 = vpop.f32.mrb[0].mxu0
    %228 = vmatprep.mubr.f32.mxu0 0.0
    %229 = vmatmul.mubr.f32.gmra.mrb[0].mxu0 %v145
    %v230 = vpop.f32.mrb[0].mxu0
    %v231 = vadd.f32 %v135, %v230
    %v232 = vpop.f32.mrb[0].mxu0
    %233 = vmatprep.mubr.f32.mxu0 0.0
    %234 = vmatmul.mubr.f32.gmra.mrb[0].mxu0 %v148
    %v235 = vpop.f32.mrb[0].mxu0
    %v236 = vadd.f32 %v135, %v235
    %v237 = vpop.f32.mrb[0].mxu0
    %238 = vdwg.mxu0
    %vm239 = vcmask 261120
    %v241 = vsel %vm239, %v124, 0
    %243 = vmatprep.subr.mxu0 0.0
    %244 = vmatpush1.msra.mxu0 %v221
    %245 = vmatprep.subr.mxu0 0.0
    %246 = vmatpush1.msra.mxu0 %v226
    %247 = vmatprep.subr.mxu0 0.0
    %248 = vmatpush1.msra.mxu0 %v231
    %249 = vmatprep.subr.mxu0 0.0
    %250 = vmatpush1.msra.mxu0 %v236
    %251 = vmatprep.subr.mxu0 0.0
    %252 = vmatpush1.msra.mxu0 0.0
    %253 = vmatprep.subr.mxu0 0.0
    %254 = vmatpush1.msra.mxu0 0.0
    %255 = vmatprep.subr.mxu0 0.0
    %256 = vmatpush1.msra.mxu0 0.0
    %257 = vmatprep.subr.mxu0 0.0
    %258 = vmatpush1.msra.mxu0 0.0
    %259 = vmatprep.subr.mxu0 0.0
    %260 = vmatpush1.msra.mxu0 0.0
    %261 = vmatprep.subr.mxu0 0.0
    %262 = vmatpush1.msra.mxu0 0.0
    %263 = vmatprep.subr.mxu0 0.0
    %264 = vmatpush1.msra.mxu0 0.0
    %265 = vmatprep.subr.mxu0 0.0
    %266 = vmatpush1.msra.mxu0 0.0
    %267 = vmatprep.subr.mxu0 0.0
    %268 = vmatpush1.msra.mxu0 0.0
    %269 = vmatprep.subr.mxu0 0.0
    %270 = vmatpush1.msra.mxu0 0.0
    %271 = vmatprep.subr.mxu0 0.0
    %272 = vmatpush1.msra.mxu0 0.0
    %273 = vmatprep.subr.mxu0 0.0
    %274 = vmatpush1.msra.mxu0 0.0
    %275 = vmatprep.subr.mxu0 0.0
    %276 = vmatpush1.msra.mxu0 0.0
    %277 = vmatprep.subr.mxu0 0.0
    %278 = vmatpush1.msra.mxu0 0.0
    %279 = vmatprep.subr.mxu0 0.0
    %280 = vmatpush1.msra.mxu0 0.0
    %281 = vmatprep.subr.mxu0 0.0
    %282 = vmatpush1.msra.mxu0 0.0
    %283 = vmatprep.subr.mxu0 0.0
    %284 = vmatpush1.msra.mxu0 0.0
    %285 = vmatprep.subr.mxu0 0.0
    %286 = vmatpush1.msra.mxu0 0.0
    %287 = vmatprep.subr.mxu0 0.0
    %288 = vmatpush1.msra.mxu0 0.0
    %289 = vmatprep.subr.mxu0 0.0
    %290 = vmatpush1.msra.mxu0 0.0
    %291 = vmatprep.subr.mxu0 0.0
    %292 = vmatpush1.msra.mxu0 0.0
    %293 = vmatprep.subr.mxu0 0.0
    %294 = vmatpush1.msra.mxu0 0.0
    %295 = vmatprep.subr.mxu0 0.0
    %296 = vmatpush1.msra.mxu0 0.0
    %297 = vmatprep.subr.mxu0 0.0
    %298 = vmatpush1.msra.mxu0 0.0
    %299 = vmatprep.subr.mxu0 0.0
    %300 = vmatpush1.msra.mxu0 0.0
    %301 = vmatprep.subr.mxu0 0.0
    %302 = vmatpush1.msra.mxu0 0.0
    %303 = vmatprep.subr.mxu0 0.0
    %304 = vmatpush1.msra.mxu0 0.0
    %305 = vmatprep.subr.mxu0 0.0
    %306 = vmatpush1.msra.mxu0 0.0
    %307 = vmatprep.mubr.f32.mxu0 0.0
    %308 = vmatmul.mubr.f32.gmra.mrb[0].mxu0 %v241
    %v309 = vpop.f32.mrb[0].mxu0
    %v310 = vadd.f32 0.0, %v309
    %v311 = vpop.f32.mrb[0].mxu0
    %312 = vdwg.mxu0
    %313 = vst.msk [vmem:[#allocation2] sm:$0xf] %vm111, %v310
    // Predicated region
    $region30: #{tpu_custom_call.1} parent=1 // pred_check
      _
    $region31: #{tpu_custom_call.1} parent=1 // pred_check_branch
      %315 = sbr.rel (0) target = $region33
    $region32: #{tpu_custom_call.1} parent=1 // pred_region
      %s317 = ssub.s32 64, 64
      %318 = vsyncadd [#allocation3], %s317
      %s320 = sshll.u32 [#allocation2], 4
      %s321 = int_to_ptr.vmem [resolvable:$true] %s320
      %323 = dma.vmem_to_hbm [thread:$0]  %s321, 64, %s7, [#allocation3]
    $region33: #{tpu_custom_call.1} parent=1 // pred_fallthru
      _
    // Predicated region
    $region34: #{tpu_custom_call.1} parent=1 // pred_check
      _
    $region35: #{tpu_custom_call.1} parent=1 // pred_check_branch
      %325 = sbr.rel (0) target = $region37
    $region36: #{tpu_custom_call.1} parent=1 // pred_region
      %326 = dma.done [#allocation3], 64
    $region37: #{tpu_custom_call.1} parent=1 // pred_fallthru
      _
    %327 = vsyncpa [#allocation3], 1

</llo_original>
